<compile_context>
chip_gen: v6e
topology: v6e:2x2x1
jax: 0.10.0
libtpu: 0.0.40
codegen_flags: <defaults>
</compile_context>

<pallas_src>
import functools
import math

import jax
import jax.numpy as jnp
from jax.experimental import pallas as pl
from jax.experimental.pallas import tpu as pltpu

_VMEM_LIMIT = 48 * 1024 * 1024  # explicit scoped-VMEM budget, safe on v5e/v6e/v7x


# --------------------- K1: RMSNorm + fused QKV + RoPE ---------------------- #

def _qkv_rope_kernel(x_ref, ln_ref, wqkv_ref, cos_ref, sin_ref, qkv_ref, *,
                     eps, nh, nkv, hd):
    x = x_ref[0].astype(jnp.float32)                          # (S, H)
    var = jnp.mean(x * x, axis=-1, keepdims=True)
    xn = (x * jax.lax.rsqrt(var + eps)) * ln_ref[...]         # f32 norm math
    qkv = jnp.dot(xn.astype(jnp.bfloat16), wqkv_ref[...],
                  preferred_element_type=jnp.float32)         # (S, Nq + 2*Nkv)

    cos = cos_ref[...]                                        # (S, hd) f32
    sin = sin_ref[...]

    def rope(t, n):  # rotate_half per head via static lane slices (no reshape)
        cos_r = jnp.concatenate([cos] * n, axis=-1) if n > 1 else cos
        sin_r = jnp.concatenate([sin] * n, axis=-1) if n > 1 else sin
        parts = []
        for j in range(n):
            lo = t[:, j * hd: j * hd + hd // 2]
            hi = t[:, j * hd + hd // 2: (j + 1) * hd]
            parts += [-hi, lo]
        rot = jnp.concatenate(parts, axis=-1)
        return t * cos_r + rot * sin_r

    nq, nk = nh * hd, nkv * hd
    q = rope(qkv[:, :nq], nh)
    k = rope(qkv[:, nq:nq + nk], nkv)
    v = qkv[:, nq + nk:]
    # single lane-dense (multiple-of-128) store instead of narrow masked stores
    qkv_ref[0] = jnp.concatenate([q, k, v], axis=-1).astype(qkv_ref.dtype)


def fused_rmsnorm_qkv_rope(x, ln_w, wqkv, cos_p, sin_p, *, eps, nh, nkv, hd):
    B, S, H = x.shape
    nout = wqkv.shape[1]
    kern = functools.partial(_qkv_rope_kernel, eps=eps, nh=nh, nkv=nkv, hd=hd)
    return pl.pallas_call(
        kern,
        out_shape=jax.ShapeDtypeStruct((B, S, nout), jnp.float32),
        grid=(B,),
        in_specs=[
            pl.BlockSpec((1, S, H), lambda b: (b, 0, 0)),
            pl.BlockSpec((1, H), lambda b: (0, 0)),
            pl.BlockSpec((H, nout), lambda b: (0, 0)),
            pl.BlockSpec((S, hd), lambda b: (0, 0)),
            pl.BlockSpec((S, hd), lambda b: (0, 0)),
        ],
        out_specs=pl.BlockSpec((1, S, nout), lambda b: (b, 0, 0)),
        compiler_params=pltpu.CompilerParams(
            dimension_semantics=("parallel",),
            vmem_limit_bytes=_VMEM_LIMIT),
    )(x, ln_w, wqkv, cos_p, sin_p)


# ------------------ K2: flash attention with GQA index_map ----------------- #

def _flash_attn_kernel(q_ref, k_ref, v_ref, mask_ref, o_ref,
                       m_sc, l_sc, acc_sc, *, scale):
    j = pl.program_id(2)

    @pl.when(j == 0)
    def _():
        m_sc[...] = jnp.full(m_sc.shape, -jnp.inf, jnp.float32)
        l_sc[...] = jnp.zeros(l_sc.shape, jnp.float32)
        acc_sc[...] = jnp.zeros(acc_sc.shape, jnp.float32)

    q = q_ref[0, 0]                                           # (S, hd)  bf16
    k = k_ref[0, 0]                                           # (Tk, hd) bf16
    v = v_ref[0, 0]                                           # (Tk, hd) bf16
    s = jax.lax.dot_general(q, k, (((1,), (1,)), ((), ())),
                            preferred_element_type=jnp.float32) * scale
    s = s + mask_ref[0, 0]                                    # additive mask, f32

    m_prev = m_sc[...]
    m_new = jnp.maximum(m_prev, jnp.max(s, axis=-1, keepdims=True))
    alpha = jnp.exp(m_prev - m_new)
    p = jnp.exp(s - m_new)
    l_sc[...] = alpha * l_sc[...] + jnp.sum(p, axis=-1, keepdims=True)
    acc_sc[...] = alpha * acc_sc[...] + jnp.dot(
        p.astype(v.dtype), v, preferred_element_type=jnp.float32)
    m_sc[...] = m_new

    @pl.when(j == pl.num_programs(2) - 1)
    def _():
        o_ref[0, 0] = (acc_sc[...] *
                       pl.reciprocal(l_sc[...], approx=True)).astype(o_ref.dtype)


def flash_attention(qh, kh, vh, mask, *, scale, groups, kv_block=512):
    B, nh, S, hd = qh.shape
    KV = kh.shape[2]
    if KV <= kv_block:
        kv_blk = KV
    else:
        kv_blk = kv_block
        assert kv_blk % 128 == 0 and KV % kv_blk == 0, "kv_block must be lane-dense"
    kern = functools.partial(_flash_attn_kernel, scale=scale)
    return pl.pallas_call(
        kern,
        out_shape=jax.ShapeDtypeStruct((B, nh, S, hd), jnp.bfloat16),
        grid=(B, nh, KV // kv_blk),
        in_specs=[
            pl.BlockSpec((1, 1, S, hd), lambda b, h, j: (b, h, 0, 0)),
            pl.BlockSpec((1, 1, kv_blk, hd), lambda b, h, j: (b, h // groups, j, 0)),
            pl.BlockSpec((1, 1, kv_blk, hd), lambda b, h, j: (b, h // groups, j, 0)),
            pl.BlockSpec((1, 1, S, kv_blk), lambda b, h, j: (b, 0, 0, j)),
        ],
        out_specs=pl.BlockSpec((1, 1, S, hd), lambda b, h, j: (b, h, 0, 0)),
        scratch_shapes=[
            pltpu.VMEM((S, 1), jnp.float32),    # running max
            pltpu.VMEM((S, 1), jnp.float32),    # running denom
            pltpu.VMEM((S, hd), jnp.float32),   # accumulator
        ],
        compiler_params=pltpu.CompilerParams(
            dimension_semantics=("parallel", "parallel", "arbitrary"),
            vmem_limit_bytes=_VMEM_LIMIT),
    )(qh, kh, vh, mask)


# ----------------------- K3: O projection + residual ----------------------- #

def _oproj_residual_kernel(attn_ref, wo_ref, res_ref, o_ref):
    o = jnp.dot(attn_ref[...], wo_ref[...], preferred_element_type=jnp.float32)
    o_ref[...] = (res_ref[...] + o).astype(o_ref.dtype)


def oproj_residual(attn2d, wo, residual, *, row_block=256):
    M, Ka = attn2d.shape
    H = wo.shape[1]
    tm = M if M <= row_block else row_block
    assert M % tm == 0
    return pl.pallas_call(
        _oproj_residual_kernel,
        out_shape=jax.ShapeDtypeStruct((M, H), jnp.float32),
        grid=(M // tm,),
        in_specs=[
            pl.BlockSpec((tm, Ka), lambda i: (i, 0)),
            pl.BlockSpec((Ka, H), lambda i: (0, 0)),
            pl.BlockSpec((tm, H), lambda i: (i, 0)),
        ],
        out_specs=pl.BlockSpec((tm, H), lambda i: (i, 0)),
        compiler_params=pltpu.CompilerParams(
            dimension_semantics=("parallel",),
            vmem_limit_bytes=_VMEM_LIMIT),
    )(attn2d, wo, residual)


# ------------------- K4: RMSNorm + gated MLP + residual -------------------- #

def _mlp_block_kernel(h_ref, ln_ref, wg_ref, wu_ref, wd_ref, o_ref, *, eps):
    h = h_ref[...].astype(jnp.float32)                        # (tm, H)
    var = jnp.mean(h * h, axis=-1, keepdims=True)
    xn = ((h * jax.lax.rsqrt(var + eps)) * ln_ref[...]).astype(jnp.bfloat16)
    g = jnp.dot(xn, wg_ref[...], preferred_element_type=jnp.float32)
    u = jnp.dot(xn, wu_ref[...], preferred_element_type=jnp.float32)
    act = (g * jax.nn.sigmoid(g)) * u                         # SiLU(gate)*up in f32
    down = jnp.dot(act.astype(jnp.bfloat16), wd_ref[...],
                   preferred_element_type=jnp.float32)
    o_ref[...] = (h + down).astype(o_ref.dtype)


def mlp_block(hidden2d, ln_w, wg, wu, wd, *, eps, row_block=256):
    M, H = hidden2d.shape
    I = wg.shape[1]
    tm = M if M <= row_block else row_block
    assert M % tm == 0
    # TODO(synk): at real Llama sizes (H=4096, I>=11008) the gate/up/down weights must be
    # tiled over N/K with f32 VMEM accumulators instead of residing whole in VMEM.
    return pl.pallas_call(
        functools.partial(_mlp_block_kernel, eps=eps),
        out_shape=jax.ShapeDtypeStruct((M, H), jnp.float32),
        grid=(M // tm,),
        in_specs=[
            pl.BlockSpec((tm, H), lambda i: (i, 0)),
            pl.BlockSpec((1, H), lambda i: (0, 0)),
            pl.BlockSpec((H, I), lambda i: (0, 0)),
            pl.BlockSpec((H, I), lambda i: (0, 0)),
            pl.BlockSpec((I, H), lambda i: (0, 0)),
        ],
        out_specs=pl.BlockSpec((tm, H), lambda i: (i, 0)),
        compiler_params=pltpu.CompilerParams(
            dimension_semantics=("parallel",),
            vmem_limit_bytes=_VMEM_LIMIT),
    )(hidden2d, ln_w, wg, wu, wd)


# ------------------------------- glue / layer ------------------------------ #

def rope_cache(max_pos, dim, base=10000.0):
    inv_freq = 1.0 / (base ** (jnp.arange(0, dim, 2, dtype=jnp.float32) / dim))
    t = jnp.arange(max_pos, dtype=jnp.float32)
    freqs = jnp.outer(t, inv_freq)
    emb = jnp.concatenate([freqs, freqs], axis=-1)
    return jnp.cos(emb), jnp.sin(emb)


def llama_decoder_layer(params, hidden_states, attention_mask, position_ids,
                        positions_embedding, cfg):
    B, S, H = hidden_states.shape
    nh, nkv, hd = cfg["num_heads"], cfg["num_kv_heads"], cfg["head_dim"]
    groups = nh // nkv
    KV = cfg["max_position_embeddings"]
    eps = cfg["rms_eps"]
    Nq, Nkv = nh * hd, nkv * hd

    cos_c, sin_c = positions_embedding                         # full (max_pos, hd) tables
    cos_p = cos_c[position_ids].astype(jnp.float32)             # (S, hd)
    sin_p = sin_c[position_ids].astype(jnp.float32)

    # fused QKV weight (bf16 for the MXU); lane-dense fused output
    wqkv = jnp.concatenate([params["wq"], params["wk"], params["wv"]],
                           axis=1).astype(jnp.bfloat16)

    # ---- K1: RMSNorm + QKV + RoPE ----
    qkv = fused_rmsnorm_qkv_rope(hidden_states, params["input_ln_w"], wqkv,
                                 cos_p, sin_p, eps=eps, nh=nh, nkv=nkv, hd=hd)
    q = qkv[..., :Nq]
    k = qkv[..., Nq:Nq + Nkv]
    v = qkv[..., Nq + Nkv:]

    # fp16 KV cache (module semantics: init_kv_cache(dtype=float16) + position scatter).
    # TODO(synk): in a real decode loop the cache is persistent state and should be passed
    # in/out with input_output_aliases instead of being re-zeroed every call.
    cache_k = jnp.zeros((B, KV, nkv, hd), jnp.float16).at[:, position_ids].set(
        k.reshape(B, S, nkv, hd).astype(jnp.float16))
    cache_v = jnp.zeros((B, KV, nkv, hd), jnp.float16).at[:, position_ids].set(
        v.reshape(B, S, nkv, hd).astype(jnp.float16))

    # keep K/V at nkv heads (GQA handled by the attention index_map); bf16 for the MXU
    kh = cache_k.transpose(0, 2, 1, 3).astype(jnp.bfloat16)    # (B, nkv, KV, hd)
    vh = cache_v.transpose(0, 2, 1, 3).astype(jnp.bfloat16)
    qh = q.reshape(B, S, nh, hd).transpose(0, 2, 1, 3).astype(jnp.bfloat16)  # (B, nh, S, hd)

    if attention_mask is None:
        # causal over absolute cache positions (also masks the unwritten cache slots)
        kv_pos = jnp.arange(KV)
        mask = jnp.where(kv_pos[None, None, None, :] <=
                         position_ids[None, None, :, None], 0.0, -1e9)
        mask = jnp.broadcast_to(mask.astype(jnp.float32), (B, 1, S, KV))
    else:
        mask = jnp.broadcast_to(attention_mask, (B, 1, S, KV)).astype(jnp.float32)

    # ---- K2: flash attention ----
    scale = 1.0 / math.sqrt(hd)
    attn = flash_attention(qh, kh, vh, mask, scale=scale, groups=groups,
                           kv_block=128)                       # (B, nh, S, hd) bf16
    attn2d = attn.transpose(0, 2, 1, 3).reshape(B * S, Nq)

    # ---- K3: O projection + residual ----
    residual = hidden_states.reshape(B * S, H)
    hidden = oproj_residual(attn2d, params["wo"].astype(jnp.bfloat16), residual)

    # ---- K4: RMSNorm + MLP + residual ----
    out = mlp_block(hidden, params["post_ln_w"],
                    params["wg"].astype(jnp.bfloat16),
                    params["wu"].astype(jnp.bfloat16),
                    params["wd"].astype(jnp.bfloat16), eps=eps)
    return out.reshape(B, S, H)


# ------------------------------ pure-JAX reference ------------------------- #

def reference_layer(params, x, mask, position_ids, cos, sin, cfg):
    eps = cfg["rms_eps"]
    B, S, H = x.shape
    nh, nkv, hd = cfg["num_heads"], cfg["num_kv_heads"], cfg["head_dim"]
    g = nh // nkv
    mp = cfg["max_position_embeddings"]

    def rms(h, w):
        var = jnp.mean(h.astype(jnp.float32) ** 2, axis=-1, keepdims=True)
        return w * (h * jax.lax.rsqrt(var + eps))

    def rot_half(t):
        return jnp.concatenate([-t[..., hd // 2:], t[..., :hd // 2]], axis=-1)

    res = x
    h = rms(x, params["input_ln_w"].reshape(-1))
    q = (h @ params["wq"]).reshape(B, S, nh, hd)
    k = (h @ params["wk"]).reshape(B, S, nkv, hd)
    v = (h @ params["wv"]).reshape(B, S, nkv, hd)
    cos_p = cos[position_ids][None, :, None, :]
    sin_p = sin[position_ids][None, :, None, :]
    q = q * cos_p + rot_half(q) * sin_p
    k = k * cos_p + rot_half(k) * sin_p
    ck = jnp.zeros((B, mp, nkv, hd), jnp.float16).at[:, position_ids].set(k.astype(jnp.float16))
    cv = jnp.zeros((B, mp, nkv, hd), jnp.float16).at[:, position_ids].set(v.astype(jnp.float16))
    kf = jnp.repeat(ck.astype(jnp.float32), g, axis=2).transpose(0, 2, 1, 3)
    vf = jnp.repeat(cv.astype(jnp.float32), g, axis=2).transpose(0, 2, 1, 3)
    qh = q.transpose(0, 2, 1, 3)
    s = jnp.einsum("bhqd,bhkd->bhqk", qh, kf) / math.sqrt(hd) + mask
    p = jax.nn.softmax(s, axis=-1)
    o = jnp.einsum("bhqk,bhkd->bhqd", p, vf).transpose(0, 2, 1, 3).reshape(B, S, H)
    h = res + (o @ params["wo"])
    res2 = h
    hn = rms(h, params["post_ln_w"].reshape(-1))
    gp = hn @ params["wg"]
    up = hn @ params["wu"]
    return res2 + (gp * jax.nn.sigmoid(gp) * up) @ params["wd"]


# ----------------------------------- main ----------------------------------- #

if __name__ == "__main__":
    cfg = dict(
        hidden_size=128,
        num_heads=2,
        num_kv_heads=1,
        head_dim=64,
        intermediate_size=256,
        max_position_embeddings=256,   # 2 KV blocks of 128 -> exercises the flash loop
        rms_eps=1e-6,
        max_batch_size=2,
    )
    B, S = 2, 8
    H, I = cfg["hidden_size"], cfg["intermediate_size"]
    nh, nkv, hd = cfg["num_heads"], cfg["num_kv_heads"], cfg["head_dim"]

    key = jax.random.PRNGKey(0)
    ks = jax.random.split(key, 10)
    params = dict(
        wq=0.02 * jax.random.normal(ks[0], (H, nh * hd), jnp.float32),
        wk=0.02 * jax.random.normal(ks[1], (H, nkv * hd), jnp.float32),
        wv=0.02 * jax.random.normal(ks[2], (H, nkv * hd), jnp.float32),
        wo=0.02 * jax.random.normal(ks[3], (nh * hd, H), jnp.float32),
        wg=0.02 * jax.random.normal(ks[4], (H, I), jnp.float32),
        wu=0.02 * jax.random.normal(ks[5], (H, I), jnp.float32),
        wd=0.02 * jax.random.normal(ks[6], (I, H), jnp.float32),
        input_ln_w=jnp.ones((1, H), jnp.float32),
        post_ln_w=jnp.ones((1, H), jnp.float32),
    )

    x = jax.random.normal(ks[7], (B, S, H), jnp.float32)
    position_ids = jnp.arange(S, dtype=jnp.int32)
    cos_cached, sin_cached = rope_cache(cfg["max_position_embeddings"], hd)
    positions_embedding = (cos_cached, sin_cached)   # full tables; indexed by position_ids

    # additive attention mask (batch, 1, q_len, kv_len): causal over absolute cache positions
    kv_pos = jnp.arange(cfg["max_position_embeddings"])
    mask = jnp.where(
        kv_pos[None, None, None, :] <= position_ids[None, None, :, None], 0.0, -1e9
    ).astype(jnp.float32)
    mask = jnp.broadcast_to(mask, (B, 1, S, cfg["max_position_embeddings"]))

    out = llama_decoder_layer(params, x, mask, position_ids, positions_embedding, cfg)
    out = jax.block_until_ready(out)

    ref = reference_layer(params, x, mask, position_ids, cos_cached, sin_cached, cfg)
    assert out.shape == (B, S, H)
    if not bool(jnp.allclose(out, ref, atol=2e-2, rtol=2e-2)):
        err = float(jnp.max(jnp.abs(out - ref)))
        raise AssertionError(f"Pallas output does not match reference (max abs err {err})")

    print("KERNEL_OK")
</pallas_src>

<mosaic_0001>
module attributes {stable_mosaic.version = 11 : i64} {
  func.func @_qkv_rope_kernel(%arg0: i32, %arg1: memref<1x8x128xf32, #tpu.memory_space<vmem>>, %arg2: memref<1x128xf32, #tpu.memory_space<vmem>>, %arg3: memref<128x256xbf16, #tpu.memory_space<vmem>>, %arg4: memref<8x64xf32, #tpu.memory_space<vmem>>, %arg5: memref<8x64xf32, #tpu.memory_space<vmem>>, %arg6: memref<1x8x256xf32, #tpu.memory_space<vmem>>) attributes {dimension_semantics = [#tpu.dimension_semantics<parallel>], iteration_bounds = array<i64: 2>, scalar_prefetch = 0 : i64, scratch_operands = 0 : i64, tpu.core_type = #tpu.core_type<tc>, window_params = [{transform_indices = @transform_0, window_bounds = array<i64: 1, 8, 128>}, {pipeline_mode = #tpu.pipeline_mode<synchronous>, transform_indices = @transform_1, window_bounds = array<i64: 1, 128>}, {pipeline_mode = #tpu.pipeline_mode<synchronous>, transform_indices = @transform_2, window_bounds = array<i64: 128, 256>}, {pipeline_mode = #tpu.pipeline_mode<synchronous>, transform_indices = @transform_3, window_bounds = array<i64: 8, 64>}, {pipeline_mode = #tpu.pipeline_mode<synchronous>, transform_indices = @transform_4, window_bounds = array<i64: 8, 64>}, {transform_indices = @transform_5, window_bounds = array<i64: 1, 8, 256>}]} {
    %c0 = arith.constant 0 : index
    %c0_0 = arith.constant 0 : index
    %c0_1 = arith.constant 0 : index
    %0 = vector.load %arg1[%c0, %c0_0, %c0_1] : memref<1x8x128xf32, #tpu.memory_space<vmem>>, vector<1x8x128xf32>
    %1 = vector.shape_cast %0 : vector<1x8x128xf32> to vector<8x128xf32>
    %2 = arith.mulf %1, %1 : vector<8x128xf32>
    %cst = arith.constant dense<0.000000e+00> : vector<8xf32>
    %3 = vector.multi_reduction <add>, %2, %cst [1] : vector<8x128xf32> to vector<8xf32>
    %4 = vector.shape_cast %3 : vector<8xf32> to vector<8x1xf32>
    %cst_2 = arith.constant 1.280000e+02 : f32
    %5 = vector.broadcast %cst_2 : f32 to vector<8x1xf32>
    %6 = arith.divf %4, %5 : vector<8x1xf32>
    %cst_3 = arith.constant 9.99999997E-7 : f32
    %7 = vector.broadcast %cst_3 : f32 to vector<8x1xf32>
    %8 = arith.addf %6, %7 : vector<8x1xf32>
    %9 = math.rsqrt %8 : vector<8x1xf32>
    %10 = vector.broadcast %9 : vector<8x1xf32> to vector<8x128xf32>
    %11 = arith.mulf %1, %10 : vector<8x128xf32>
    %c0_4 = arith.constant 0 : index
    %c0_5 = arith.constant 0 : index
    %12 = vector.load %arg2[%c0_4, %c0_5] : memref<1x128xf32, #tpu.memory_space<vmem>>, vector<1x128xf32>
    %13 = vector.broadcast %12 : vector<1x128xf32> to vector<8x128xf32>
    %14 = arith.mulf %11, %13 : vector<8x128xf32>
    %15 = arith.truncf %14 : vector<8x128xf32> to vector<8x128xbf16>
    %c0_6 = arith.constant 0 : index
    %c0_7 = arith.constant 0 : index
    %16 = vector.load %arg3[%c0_6, %c0_7] : memref<128x256xbf16, #tpu.memory_space<vmem>>, vector<128x256xbf16>
    %cst_8 = arith.constant dense<0.000000e+00> : vector<8x256xf32>
    %17 = tpu.matmul %15, %16, %cst_8 {dimension_numbers = #tpu.dot_dimension_numbers<[1], [0], [0], [1], [0, 0, 1, 1], [], []>} : vector<8x128xbf16>, vector<128x256xbf16>, vector<8x256xf32> -> vector<8x256xf32>
    %c0_9 = arith.constant 0 : index
    %c0_10 = arith.constant 0 : index
    %18 = vector.load %arg4[%c0_9, %c0_10] : memref<8x64xf32, #tpu.memory_space<vmem>>, vector<8x64xf32>
    %c0_11 = arith.constant 0 : index
    %c0_12 = arith.constant 0 : index
    %19 = vector.load %arg5[%c0_11, %c0_12] : memref<8x64xf32, #tpu.memory_space<vmem>>, vector<8x64xf32>
    %20 = vector.extract_strided_slice %17 {offsets = [0, 0], sizes = [8, 128], strides = [1, 1]} : vector<8x256xf32> to vector<8x128xf32>
    %21 = tpu.concatenate %18, %18 in 1 : vector<8x64xf32>, vector<8x64xf32> -> vector<8x128xf32>
    %22 = tpu.concatenate %19, %19 in 1 : vector<8x64xf32>, vector<8x64xf32> -> vector<8x128xf32>
    %23 = vector.extract_strided_slice %20 {offsets = [0, 0], sizes = [8, 32], strides = [1, 1]} : vector<8x128xf32> to vector<8x32xf32>
    %24 = vector.extract_strided_slice %20 {offsets = [0, 32], sizes = [8, 32], strides = [1, 1]} : vector<8x128xf32> to vector<8x32xf32>
    %cst_13 = arith.constant 0.000000e+00 : f32
    %25 = vector.broadcast %cst_13 : f32 to vector<8x32xf32>
    %26 = arith.subf %25, %24 : vector<8x32xf32>
    %27 = vector.extract_strided_slice %20 {offsets = [0, 64], sizes = [8, 32], strides = [1, 1]} : vector<8x128xf32> to vector<8x32xf32>
    %28 = vector.extract_strided_slice %20 {offsets = [0, 96], sizes = [8, 32], strides = [1, 1]} : vector<8x128xf32> to vector<8x32xf32>
    %cst_14 = arith.constant 0.000000e+00 : f32
    %29 = vector.broadcast %cst_14 : f32 to vector<8x32xf32>
    %30 = arith.subf %29, %28 : vector<8x32xf32>
    %31 = tpu.concatenate %26, %23, %30, %27 in 1 : vector<8x32xf32>, vector<8x32xf32>, vector<8x32xf32>, vector<8x32xf32> -> vector<8x128xf32>
    %32 = arith.mulf %20, %21 : vector<8x128xf32>
    %33 = arith.mulf %31, %22 : vector<8x128xf32>
    %34 = arith.addf %32, %33 : vector<8x128xf32>
    %35 = vector.extract_strided_slice %17 {offsets = [0, 128], sizes = [8, 64], strides = [1, 1]} : vector<8x256xf32> to vector<8x64xf32>
    %36 = vector.extract_strided_slice %35 {offsets = [0, 0], sizes = [8, 32], strides = [1, 1]} : vector<8x64xf32> to vector<8x32xf32>
    %37 = vector.extract_strided_slice %35 {offsets = [0, 32], sizes = [8, 32], strides = [1, 1]} : vector<8x64xf32> to vector<8x32xf32>
    %cst_15 = arith.constant 0.000000e+00 : f32
    %38 = vector.broadcast %cst_15 : f32 to vector<8x32xf32>
    %39 = arith.subf %38, %37 : vector<8x32xf32>
    %40 = tpu.concatenate %39, %36 in 1 : vector<8x32xf32>, vector<8x32xf32> -> vector<8x64xf32>
    %41 = arith.mulf %35, %18 : vector<8x64xf32>
    %42 = arith.mulf %40, %19 : vector<8x64xf32>
    %43 = arith.addf %41, %42 : vector<8x64xf32>
    %44 = vector.extract_strided_slice %17 {offsets = [0, 192], sizes = [8, 64], strides = [1, 1]} : vector<8x256xf32> to vector<8x64xf32>
    %45 = tpu.concatenate %34, %43, %44 in 1 : vector<8x128xf32>, vector<8x64xf32>, vector<8x64xf32> -> vector<8x256xf32>
    %c0_16 = arith.constant 0 : index
    %c0_17 = arith.constant 0 : index
    %c0_18 = arith.constant 0 : index
    %46 = vector.load %arg6[%c0_16, %c0_17, %c0_18] : memref<1x8x256xf32, #tpu.memory_space<vmem>>, vector<1x8x256xf32>
    %47 = vector.shape_cast %46 : vector<1x8x256xf32> to vector<8x256xf32>
    %48 = vector.shape_cast %45 : vector<8x256xf32> to vector<1x8x256xf32>
    tpu.vector_store %arg6[%c0_16, %c0_17, %c0_18], %48 {strides = array<i32>} : memref<1x8x256xf32, #tpu.memory_space<vmem>>, vector<1x8x256xf32>,
    return
  }
  func.func @transform_0(%arg0: i32) -> (i32, i32, i32) {
    %c0_i32 = arith.constant 0 : i32
    %c0_i32_0 = arith.constant 0 : i32
    %c0_i32_1 = arith.constant 0 : i32
    return %arg0, %c0_i32, %c0_i32_0 : i32, i32, i32
  }
  func.func @transform_1(%arg0: i32) -> (i32, i32) {
    %c0_i32 = arith.constant 0 : i32
    %c0_i32_0 = arith.constant 0 : i32
    %c0_i32_1 = arith.constant 0 : i32
    return %c0_i32, %c0_i32_0 : i32, i32
  }
  func.func @transform_2(%arg0: i32) -> (i32, i32) {
    %c0_i32 = arith.constant 0 : i32
    %c0_i32_0 = arith.constant 0 : i32
    %c0_i32_1 = arith.constant 0 : i32
    return %c0_i32, %c0_i32_0 : i32, i32
  }
  func.func @transform_3(%arg0: i32) -> (i32, i32) {
    %c0_i32 = arith.constant 0 : i32
    %c0_i32_0 = arith.constant 0 : i32
    %c0_i32_1 = arith.constant 0 : i32
    return %c0_i32, %c0_i32_0 : i32, i32
  }
  func.func @transform_4(%arg0: i32) -> (i32, i32) {
    %c0_i32 = arith.constant 0 : i32
    %c0_i32_0 = arith.constant 0 : i32
    %c0_i32_1 = arith.constant 0 : i32
    return %c0_i32, %c0_i32_0 : i32, i32
  }
  func.func @transform_5(%arg0: i32) -> (i32, i32, i32) {
    %c0_i32 = arith.constant 0 : i32
    %c0_i32_0 = arith.constant 0 : i32
    %c0_i32_1 = arith.constant 0 : i32
    return %arg0, %c0_i32, %c0_i32_0 : i32, i32, i32
  }
}

</mosaic_0001>

<llo_original>
// kernel: tpu_custom_call.1
$region0: #{tpu_custom_call.1}
  #allocation0 [shape = 'u32[]', space=smem, size = 0x4, offset = 0x4, fixed_abs, tag = 'smem constant byte address 0x4 - core index']
  #allocation1 [shape = 'u32[144,128]{1,0:T(1,128)}', space=vmem, size = 0x12000, scoped, tag = 'internal scratch']
  %s0 = inlined_call_operand.hbm [shape: f32[2,8,128], index: 0, kind: input, shape index: {}]
  %s1 = inlined_call_operand.vmem [shape: f32[1,128], index: 1, kind: input, shape index: {}]
  %s2 = inlined_call_operand.hbm [shape: bf16[128,256], index: 2, kind: input, shape index: {}]
  %s3 = inlined_call_operand.hbm [shape: f32[8,64], index: 3, kind: input, shape index: {}]
  %s4 = inlined_call_operand.hbm [shape: f32[8,64], index: 4, kind: input, shape index: {}]
  %s5 = inlined_call_operand.hbm [shape: f32[2,8,256], index: 5, kind: output, shape index: {}]
  %s6 = sld [smem:[#allocation0]]
  $region69: #{tpu_custom_call.1} parent=0
    _
  %s8 = ssub.s32 1, %s6
  %s9 = scalar_select 0, %s8, %s6
  $region1: #{tpu_custom_call.1} parent=0
    #allocation2 [shape = 'u8[8192]{0}', space=vmem, size = 0x2000, scoped, tag = 'input window, operand 0']
    #allocation3 [shape = 's32[2]{0}', space=sflag, size = 0x8, scoped, tag = 'scoped memory for tpu_custom_call.1']
    #allocation4 [shape = 's32[2]{0}', space=sflag, size = 0x8, scoped, tag = 'scoped memory for tpu_custom_call.1']
    #allocation5 [shape = 'u8[65536]{0}', space=vmem, size = 0x10000, scoped, tag = 'input window, operand 2, single buffered']
    #allocation6 [shape = 's32[1]{0}', space=sflag, size = 0x4, scoped, tag = 'scoped memory for tpu_custom_call.1']
    #allocation7 [shape = 'u8[4096]{0}', space=vmem, size = 0x1000, scoped, tag = 'input window, operand 3, single buffered']
    #allocation8 [shape = 'u8[4096]{0}', space=vmem, size = 0x1000, scoped, tag = 'input window, operand 4, single buffered']
    #allocation9 [shape = 's32[1]{0}', space=sflag, size = 0x4, scoped, tag = 'scoped memory for tpu_custom_call.1']
    #allocation10 [shape = 'u8[16384]{0}', space=vmem, size = 0x4000, scoped, tag = 'output window, operand 0']
    %10 = vsyncpa [#allocation3], 0
    %s11 = scalar_lea.sflag [#allocation3], 1
    %12 = vsyncpa %s11, 0
    %13 = vsyncpa [#allocation6], 0
    %14 = vsyncpa [#allocation9], 0
    %15 = vsyncpa [#allocation4], 0
    %s16 = scalar_lea.sflag [#allocation4], 1
    %17 = vsyncpa %s16, 0
    loop: start=0, step=1, limit=4
    $region2: #{tpu_custom_call.1} parent=1 // loop_pre_header
      _
    $region3: #{tpu_custom_call.1} parent=1 // loop_header
      %s19 = sphi 0, %s23
      %p20 = scmp.ge.s32.totalorder %s19, 4
      %s29 = sphi 0, %s31
      %s32 = sphi 0, %s29
      %s33 = sphi 0, %s32
      %s49 = sphi 0, %s33
      %s53 = sphi 0, %s53
      %s55 = sphi 0, %s53
      %s56 = sphi 0, %s55
      %s70 = sphi 0, %s56
      %s74 = sphi 0, %s74
      %s76 = sphi 0, %s74
      %s77 = sphi 0, %s76
      %s91 = sphi 0, %s77
      %s95 = sphi 0, %s95
      %s97 = sphi 0, %s95
      %s98 = sphi 0, %s97
      %s112 = sphi 0, %s98
      %s116 = sphi 0, %s116
      %s118 = sphi 0, %s116
      %s119 = sphi 0, %s118
      %s133 = sphi 0, %s119
      %s139 = sphi 0, %s141
      %s142 = sphi 0, %s139
      %s143 = sphi 0, %s142
      %s159 = sphi 0, %s143
    $region4: #{tpu_custom_call.1} parent=1 // loop_header_branch
      %22 = sbr.rel (%p20) target = $region8
    $region5: #{tpu_custom_call.1} parent=1 // loop_body
      %s24 = ssub.s32 %s19, 1
      %s25 = ssub.s32 %s19, 2
      %s26 = sadd.s32 %s19, 1
      %s27 = ssub.s32 %s19, %s26
      %p28 = scmp.eq.s32.totalorder %s27, 0
      %s30 = sadd.s32 %s29, 1
      %s31 = scalar_select %p28, %s29, %s30
      %p34 = pneg %p28
      %p35 = scmp.eq.s32.totalorder %s19, 1
      %p36 = por %p34, %p35
      %p37 = scmp.ne.s32.totalorder %s29, %s32
      %p38 = scmp.eq.s32.totalorder %s19, 0
      %p39 = por %p37, %p38
      %p40 = scmp.ne.s32.totalorder %s29, %s32
      %p41 = scmp.eq.s32.totalorder %s24, 1
      %p42 = por %p40, %p41
      %p43 = scmp.ne.s32.totalorder %s32, %s33
      %p44 = scmp.eq.s32.totalorder %s24, 0
      %p45 = por %p43, %p44
      %p46 = scmp.ne.s32.totalorder %s32, %s33
      %p47 = scmp.eq.s32.totalorder %s25, 1
      %p48 = por %p46, %p47
      %p50 = scmp.ne.s32.totalorder %s33, %s49
      %p51 = scmp.eq.s32.totalorder %s25, 0
      %p52 = por %p50, %p51
      %s54 = sadd.s32 %s53, 1
      %p57 = scmp.eq.s32.totalorder %s19, 1
      %p58 = scmp.ne.s32.totalorder %s53, %s55
      %p59 = scmp.eq.s32.totalorder %s19, 0
      %p60 = por %p58, %p59
      %p61 = scmp.ne.s32.totalorder %s53, %s55
      %p62 = scmp.eq.s32.totalorder %s24, 1
      %p63 = por %p61, %p62
      %p64 = scmp.ne.s32.totalorder %s55, %s56
      %p65 = scmp.eq.s32.totalorder %s24, 0
      %p66 = por %p64, %p65
      %p67 = scmp.ne.s32.totalorder %s55, %s56
      %p68 = scmp.eq.s32.totalorder %s25, 1
      %p69 = por %p67, %p68
      %p71 = scmp.ne.s32.totalorder %s56, %s70
      %p72 = scmp.eq.s32.totalorder %s25, 0
      %p73 = por %p71, %p72
      %s75 = sadd.s32 %s74, 1
      %p78 = scmp.eq.s32.totalorder %s19, 1
      %p79 = scmp.ne.s32.totalorder %s74, %s76
      %p80 = scmp.eq.s32.totalorder %s19, 0
      %p81 = por %p79, %p80
      %p82 = scmp.ne.s32.totalorder %s74, %s76
      %p83 = scmp.eq.s32.totalorder %s24, 1
      %p84 = por %p82, %p83
      %p85 = scmp.ne.s32.totalorder %s76, %s77
      %p86 = scmp.eq.s32.totalorder %s24, 0
      %p87 = por %p85, %p86
      %p88 = scmp.ne.s32.totalorder %s76, %s77
      %p89 = scmp.eq.s32.totalorder %s25, 1
      %p90 = por %p88, %p89
      %p92 = scmp.ne.s32.totalorder %s77, %s91
      %p93 = scmp.eq.s32.totalorder %s25, 0
      %p94 = por %p92, %p93
      %s96 = sadd.s32 %s95, 1
      %p99 = scmp.eq.s32.totalorder %s19, 1
      %p100 = scmp.ne.s32.totalorder %s95, %s97
      %p101 = scmp.eq.s32.totalorder %s19, 0
      %p102 = por %p100, %p101
      %p103 = scmp.ne.s32.totalorder %s95, %s97
      %p104 = scmp.eq.s32.totalorder %s24, 1
      %p105 = por %p103, %p104
      %p106 = scmp.ne.s32.totalorder %s97, %s98
      %p107 = scmp.eq.s32.totalorder %s24, 0
      %p108 = por %p106, %p107
      %p109 = scmp.ne.s32.totalorder %s97, %s98
      %p110 = scmp.eq.s32.totalorder %s25, 1
      %p111 = por %p109, %p110
      %p113 = scmp.ne.s32.totalorder %s98, %s112
      %p114 = scmp.eq.s32.totalorder %s25, 0
      %p115 = por %p113, %p114
      %s117 = sadd.s32 %s116, 1
      %p120 = scmp.eq.s32.totalorder %s19, 1
      %p121 = scmp.ne.s32.totalorder %s116, %s118
      %p122 = scmp.eq.s32.totalorder %s19, 0
      %p123 = por %p121, %p122
      %p124 = scmp.ne.s32.totalorder %s116, %s118
      %p125 = scmp.eq.s32.totalorder %s24, 1
      %p126 = por %p124, %p125
      %p127 = scmp.ne.s32.totalorder %s118, %s119
      %p128 = scmp.eq.s32.totalorder %s24, 0
      %p129 = por %p127, %p128
      %p130 = scmp.ne.s32.totalorder %s118, %s119
      %p131 = scmp.eq.s32.totalorder %s25, 1
      %p132 = por %p130, %p131
      %p134 = scmp.ne.s32.totalorder %s119, %s133
      %p135 = scmp.eq.s32.totalorder %s25, 0
      %p136 = por %p134, %p135
      %s137 = ssub.s32 %s19, %s26
      %p138 = scmp.eq.s32.totalorder %s137, 0
      %s140 = sadd.s32 %s139, 1
      %s141 = scalar_select %p138, %s139, %s140
      %p144 = pneg %p138
      %p145 = scmp.eq.s32.totalorder %s19, 1
      %p146 = por %p144, %p145
      %p147 = scmp.ne.s32.totalorder %s139, %s142
      %p148 = scmp.eq.s32.totalorder %s19, 0
      %p149 = por %p147, %p148
      %p150 = scmp.ne.s32.totalorder %s139, %s142
      %p151 = scmp.eq.s32.totalorder %s24, 1
      %p152 = por %p150, %p151
      %p153 = scmp.ne.s32.totalorder %s142, %s143
      %p154 = scmp.eq.s32.totalorder %s24, 0
      %p155 = por %p153, %p154
      %p156 = scmp.ne.s32.totalorder %s142, %s143
      %p157 = scmp.eq.s32.totalorder %s25, 1
      %p158 = por %p156, %p157
      %p160 = scmp.ne.s32.totalorder %s143, %s159
      %p161 = scmp.eq.s32.totalorder %s25, 0
      %p162 = por %p160, %p161
      %p163 = scmp.le.s32.totalorder 1, %s19
      %p164 = scmp.lt.s32.totalorder %s19, 3
      %p165 = pnand %p163, %p164
      %p166 = pneg %p165
      // Predicated region
      $region9: #{tpu_custom_call.1} parent=5 // pred_check
        _
      $region10: #{tpu_custom_call.1} parent=5 // pred_check_branch
        %168 = sbr.rel (%p165) target = $region12
      $region11: #{tpu_custom_call.1} parent=5 // pred_region
        %s169 = ssub.s32 %s19, 1
        // Predicated region
        $region13: #{tpu_custom_call.1} parent=11 // pred_check
          %p170 = pneg %p66
        $region14: #{tpu_custom_call.1} parent=11 // pred_check_branch
          %172 = sbr.rel (%p170) target = $region16
        $region15: #{tpu_custom_call.1} parent=11 // pred_region
          _
        $region16: #{tpu_custom_call.1} parent=11 // pred_fallthru
          _
        // Predicated region
        $region17: #{tpu_custom_call.1} parent=11 // pred_check
          %p173 = pneg %p87
        $region18: #{tpu_custom_call.1} parent=11 // pred_check_branch
          %175 = sbr.rel (%p173) target = $region20
        $region19: #{tpu_custom_call.1} parent=11 // pred_region
          %s177 = ssub.s32 2048, 2048
          %178 = vsyncadd [#allocation6], %s177
          %s179 = sshll.u32 [#allocation5], 4
          %s180 = int_to_ptr.vmem [resolvable:$true] %s179
          %185 = dma.hbm_to_vmem [thread:$0]  %s2, 2048, %s180, [#allocation6], 128, 128, 8
        $region20: #{tpu_custom_call.1} parent=11 // pred_fallthru
          _
        // Predicated region
        $region21: #{tpu_custom_call.1} parent=11 // pred_check
          %p186 = pneg %p108
        $region22: #{tpu_custom_call.1} parent=11 // pred_check_branch
          %188 = sbr.rel (%p186) target = $region24
        $region23: #{tpu_custom_call.1} parent=11 // pred_region
          %s190 = ssub.s32 128, 128
          %191 = vsyncadd [#allocation6], %s190
          %s193 = sshll.u32 [#allocation7], 4
          %s194 = int_to_ptr.vmem [resolvable:$true] %s193
          %196 = dma.hbm_to_vmem [thread:$0]  %s3, 128, %s194, [#allocation6]
        $region24: #{tpu_custom_call.1} parent=11 // pred_fallthru
          _
        // Predicated region
        $region25: #{tpu_custom_call.1} parent=11 // pred_check
          %p197 = pneg %p129
        $region26: #{tpu_custom_call.1} parent=11 // pred_check_branch
          %199 = sbr.rel (%p197) target = $region28
        $region27: #{tpu_custom_call.1} parent=11 // pred_region
          %s201 = ssub.s32 128, 128
          %202 = vsyncadd [#allocation9], %s201
          %s204 = sshll.u32 [#allocation8], 4
          %s205 = int_to_ptr.vmem [resolvable:$true] %s204
          %207 = dma.hbm_to_vmem [thread:$0]  %s4, 128, %s205, [#allocation9]
        $region28: #{tpu_custom_call.1} parent=11 // pred_fallthru
          _
      $region12: #{tpu_custom_call.1} parent=5 // pred_fallthru
        _
      %p208 = scmp.lt.s32.totalorder %s19, 2
      // Predicated region
      $region29: #{tpu_custom_call.1} parent=5 // pred_check
        %p209 = pneg %p208
      $region30: #{tpu_custom_call.1} parent=5 // pred_check_branch
        %211 = sbr.rel (%p209) target = $region32
      $region31: #{tpu_custom_call.1} parent=5 // pred_region
        // Predicated region
        $region33: #{tpu_custom_call.1} parent=31 // pred_check
          %p212 = pneg %p39
        $region34: #{tpu_custom_call.1} parent=31 // pred_check_branch
          %214 = sbr.rel (%p212) target = $region36
        $region35: #{tpu_custom_call.1} parent=31 // pred_region
          %s215 = sand.u32 %s29, 1
          %s216 = scalar_lea.sflag [#allocation3], %s215
          %s217 = sand.u32 %s29, 1
          %s218 = smul.addr %s217, 8
          %s219 = scalar_lea.vmem [#allocation2], %s218
          %s221 = ssub.s32 128, 128
          %222 = vsyncadd %s216, %s221
          %s223 = smul.addr %s19, 128
          %s224 = scalar_lea.hbm %s0, %s223
          %s226 = sshll.u32 %s219, 4
          %s227 = int_to_ptr.vmem [resolvable:$true] %s226
          %229 = dma.hbm_to_vmem [thread:$0]  %s224, 128, %s227, %s216
        $region36: #{tpu_custom_call.1} parent=31 // pred_fallthru
          _
      $region32: #{tpu_custom_call.1} parent=5 // pred_fallthru
        _
      %p230 = scmp.le.s32.totalorder 1, %s19
      %p231 = scmp.lt.s32.totalorder %s19, 3
      %p232 = pnand %p230, %p231
      %p233 = pneg %p232
      // Predicated region
      $region37: #{tpu_custom_call.1} parent=5 // pred_check
        _
      $region38: #{tpu_custom_call.1} parent=5 // pred_check_branch
        %235 = sbr.rel (%p232) target = $region40
      $region39: #{tpu_custom_call.1} parent=5 // pred_region
        %s236 = ssub.s32 %s19, 1
        %s237 = sand.u32 %s32, 1
        %s238 = scalar_lea.sflag [#allocation3], %s237
        %s239 = sand.u32 %s32, 1
        %s240 = smul.addr %s239, 8
        %s241 = scalar_lea.vmem [#allocation2], %s240
        // Predicated region
        $region41: #{tpu_custom_call.1} parent=39 // pred_check
          %p242 = pneg %p45
        $region42: #{tpu_custom_call.1} parent=39 // pred_check_branch
          %244 = sbr.rel (%p242) target = $region44
        $region43: #{tpu_custom_call.1} parent=39 // pred_region
          %245 = dma.done %s238, 128
        $region44: #{tpu_custom_call.1} parent=39 // pred_fallthru
          _
        // Predicated region
        $region45: #{tpu_custom_call.1} parent=39 // pred_check
          %p246 = pneg %p87
        $region46: #{tpu_custom_call.1} parent=39 // pred_check_branch
          %248 = sbr.rel (%p246) target = $region48
        $region47: #{tpu_custom_call.1} parent=39 // pred_region
          %249 = dma.done [#allocation6], 2048
        $region48: #{tpu_custom_call.1} parent=39 // pred_fallthru
          _
        // Predicated region
        $region49: #{tpu_custom_call.1} parent=39 // pred_check
          %p250 = pneg %p108
        $region50: #{tpu_custom_call.1} parent=39 // pred_check_branch
          %252 = sbr.rel (%p250) target = $region52
        $region51: #{tpu_custom_call.1} parent=39 // pred_region
          %253 = dma.done [#allocation6], 128
        $region52: #{tpu_custom_call.1} parent=39 // pred_fallthru
          _
        // Predicated region
        $region53: #{tpu_custom_call.1} parent=39 // pred_check
          %p254 = pneg %p129
        $region54: #{tpu_custom_call.1} parent=39 // pred_check_branch
          %256 = sbr.rel (%p254) target = $region56
        $region55: #{tpu_custom_call.1} parent=39 // pred_region
          %257 = dma.done [#allocation9], 128
        $region56: #{tpu_custom_call.1} parent=39 // pred_fallthru
          _
        %s258 = sand.u32 %s32, 1
        %s259 = scalar_lea.sflag [#allocation3], %s258
        %s260 = sand.u32 %s32, 1
        %s261 = smul.addr %s260, 8
        %s262 = scalar_lea.vmem [#allocation2], %s261
        %p263 = pneg %p45
        %p264 = pneg %p42
        %p265 = pneg %p66
        %p266 = pneg %p63
        %p267 = pneg %p87
        %p268 = pneg %p84
        %p269 = pneg %p108
        %p270 = pneg %p105
        %p271 = pneg %p129
        %p272 = pneg %p126
        %p273 = pneg %p155
        %p274 = pneg %p152
        %s275 = sand.u32 %s142, 1
        %s276 = scalar_lea.sflag [#allocation4], %s275
        %s277 = sand.u32 %s142, 1
        %s278 = smul.addr %s277, 16
        %s279 = scalar_lea.vmem [#allocation10], %s278
        %v281 = vld [vmem:[%s241] sm:$0xff]
        %v282 = vmul.f32 %v281, %v281
        %283 = vadd.xlane.f32.xlu0 %v282
        %v284 = vpop.xlane.xlu0 %283
        %v285 = vrcp.pop 128.0
        %v286 = vmul.f32 %v284, %v285
        %v287 = vadd.f32 %v286, 1e-06
        %v288 = vrsqrt.pop %v287
        %v289 = vmul.f32 %v281, %v288
        %v290 = vld [vmem:[%s1] sm:$0x1]
        %v292 = vlaneseq
        %v293 = vshrl.u32 %v292, 7
        %v294 = vsub.s32 0, %v293
        %v295 = vrot.slane %v290, %v294
        %v297 = vmul.f32 %v289, %v295
        %v298 = vpack.c.bf16 %v297, %v297
        %v299 = vld [vmem:[#allocation5] sm:$0xff]
        %v300 = vld [vmem:[#allocation5 + $0x8] sm:$0xff]
        %v301 = vld [vmem:[#allocation5 + $0x10] sm:$0xff]
        %v302 = vld [vmem:[#allocation5 + $0x18] sm:$0xff]
        %v303 = vld [vmem:[#allocation5 + $0x20] sm:$0xff]
        %v304 = vld [vmem:[#allocation5 + $0x28] sm:$0xff]
        %v305 = vld [vmem:[#allocation5 + $0x30] sm:$0xff]
        %v306 = vld [vmem:[#allocation5 + $0x38] sm:$0xff]
        %v307 = vld [vmem:[#allocation5 + $0x40] sm:$0xff]
        %v308 = vld [vmem:[#allocation5 + $0x48] sm:$0xff]
        %v309 = vld [vmem:[#allocation5 + $0x50] sm:$0xff]
        %v310 = vld [vmem:[#allocation5 + $0x58] sm:$0xff]
        %v311 = vld [vmem:[#allocation5 + $0x60] sm:$0xff]
        %v312 = vld [vmem:[#allocation5 + $0x68] sm:$0xff]
        %v313 = vld [vmem:[#allocation5 + $0x70] sm:$0xff]
        %v314 = vld [vmem:[#allocation5 + $0x78] sm:$0xff]
        %v331 = vunpack.c.l.b16 %v299
        %v332 = vunpack.c.h.b16 %v299
        %v333 = vunpack.c.l.b16 %v300
        %v334 = vunpack.c.h.b16 %v300
        %v335 = vunpack.c.l.b16 %v301
        %v336 = vunpack.c.h.b16 %v301
        %v337 = vunpack.c.l.b16 %v302
        %v338 = vunpack.c.h.b16 %v302
        %v339 = vunpack.c.l.b16 %v303
        %v340 = vunpack.c.h.b16 %v303
        %v341 = vunpack.c.l.b16 %v304
        %v342 = vunpack.c.h.b16 %v304
        %v343 = vunpack.c.l.b16 %v305
        %v344 = vunpack.c.h.b16 %v305
        %v345 = vunpack.c.l.b16 %v306
        %v346 = vunpack.c.h.b16 %v306
        %v347 = vunpack.c.l.b16 %v307
        %v348 = vunpack.c.h.b16 %v307
        %v349 = vunpack.c.l.b16 %v308
        %v350 = vunpack.c.h.b16 %v308
        %v351 = vunpack.c.l.b16 %v309
        %v352 = vunpack.c.h.b16 %v309
        %v353 = vunpack.c.l.b16 %v310
        %v354 = vunpack.c.h.b16 %v310
        %v355 = vunpack.c.l.b16 %v311
        %v356 = vunpack.c.h.b16 %v311
        %v357 = vunpack.c.l.b16 %v312
        %v358 = vunpack.c.h.b16 %v312
        %v359 = vunpack.c.l.b16 %v313
        %v360 = vunpack.c.h.b16 %v313
        %v361 = vunpack.c.l.b16 %v314
        %v362 = vunpack.c.h.b16 %v314
        %v363 = vpack.c.b16 %v333, %v331
        %v364 = vpack.c.b16 %v334, %v332
        %v365 = vpack.c.b16 %v337, %v335
        %v366 = vpack.c.b16 %v338, %v336
        %v367 = vpack.c.b16 %v341, %v339
        %v368 = vpack.c.b16 %v342, %v340
        %v369 = vpack.c.b16 %v345, %v343
        %v370 = vpack.c.b16 %v346, %v344
        %v371 = vpack.c.b16 %v349, %v347
        %v372 = vpack.c.b16 %v350, %v348
        %v373 = vpack.c.b16 %v353, %v351
        %v374 = vpack.c.b16 %v354, %v352
        %v375 = vpack.c.b16 %v357, %v355
        %v376 = vpack.c.b16 %v358, %v356
        %v377 = vpack.c.b16 %v361, %v359
        %v378 = vpack.c.b16 %v362, %v360
        %395 = vmatprep.subr.bf16.mxu0 %v378
        %396 = vmatpush1.bf16.msra.mxu0 %v377
        %397 = vmatprep.subr.bf16.mxu0 %v376
        %398 = vmatpush1.bf16.msra.mxu0 %v375
        %399 = vmatprep.subr.bf16.mxu0 %v374
        %400 = vmatpush1.bf16.msra.mxu0 %v373
        %401 = vmatprep.subr.bf16.mxu0 %v372
        %402 = vmatpush1.bf16.msra.mxu0 %v371
        %403 = vmatprep.subr.bf16.mxu0 %v370
        %404 = vmatpush1.bf16.msra.mxu0 %v369
        %405 = vmatprep.subr.bf16.mxu0 %v368
        %406 = vmatpush1.bf16.msra.mxu0 %v367
        %407 = vmatprep.subr.bf16.mxu0 %v366
        %408 = vmatpush1.bf16.msra.mxu0 %v365
        %409 = vmatprep.subr.bf16.mxu0 %v364
        %410 = vmatpush1.bf16.msra.mxu0 %v363
        %411 = vmatprep.subr.bf16.mxu0 0
        %412 = vmatpush2.bf16.msra.mxu0 0
        %413 = vmatprep.subr.bf16.mxu0 0
        %414 = vmatpush2.bf16.msra.mxu0 0
        %415 = vmatprep.subr.bf16.mxu0 0
        %416 = vmatpush2.bf16.msra.mxu0 0
        %417 = vmatprep.subr.bf16.mxu0 0
        %418 = vmatpush2.bf16.msra.mxu0 0
        %419 = vmatprep.subr.bf16.mxu0 0
        %420 = vmatpush2.bf16.msra.mxu0 0
        %421 = vmatprep.subr.bf16.mxu0 0
        %422 = vmatpush2.bf16.msra.mxu0 0
        %423 = vmatprep.subr.bf16.mxu0 0
        %424 = vmatpush2.bf16.msra.mxu0 0
        %425 = vmatprep.subr.bf16.mxu0 0
        %426 = vmatpush2.bf16.msra.mxu0 0
        %427 = vmatprep.mubr.bf16.mxu0 0
        %428 = vmatmul.mubr.bf16.gmra.mxu0 %v298
        %v429 = vpop.f32.mrf.mxu0
        %v430 = vadd.f32 0.0, %v429
        %v431 = vpop.f32.mrf.mxu0
        %v432 = vadd.f32 0.0, %v431
        %v433 = vpop.f32.mrf.mxu0
        %v434 = vpop.f32.mrf.mxu0
        %435 = vdwg.mxu0
        %v436 = vld [vmem:[#allocation7] sm:$0xff]
        %v437 = vld [vmem:[#allocation8] sm:$0xff]
        %439 = vrot.lane.b32.xlu0 %v436, 64
        %v440 = vpop.permute.xlu0 %439
        %vm442 = vcmask 523264
        %v443 = vsel %vm442, %v436, %v440
        %445 = vrot.lane.b32.xlu0 %v437, 64
        %v446 = vpop.permute.xlu0 %445
        %v448 = vsel %vm442, %v437, %v446
        %v449 = vsub.f32 0.0, %v430
        %451 = vrot.lane.b32.xlu0 %v449, 96
        %v452 = vpop.permute.xlu0 %451
        %455 = vrot.lane.b32.xlu0 %v430, 32
        %v456 = vpop.permute.xlu0 %455
        %vm458 = vcmask 261120
        %v459 = vsel %vm458, %v452, %v456
        %v460 = vsel %vm442, %v459, %v452
        %vm461 = vcmask 785408
        %v462 = vsel %vm461, %v460, %v456
        %v463 = vmul.f32 %v430, %v443
        %v464 = vmul.f32 %v462, %v448
        %v465 = vadd.f32 %v463, %v464
        %v466 = vsub.f32 0.0, %v432
        %468 = vrot.lane.b32.xlu0 %v466, 96
        %v469 = vpop.permute.xlu0 %468
        %472 = vrot.lane.b32.xlu0 %v432, 32
        %v473 = vpop.permute.xlu0 %472
        %v475 = vsel %vm458, %v469, %v473
        %v476 = vmul.f32 %v432, %v436
        %v477 = vmul.f32 %v475, %v437
        %v478 = vadd.f32 %v476, %v477
        %v479 = vsel %vm442, %v478, %v432
        %480 = vst [vmem:[%s279] sm:$0xff] %v465
        %481 = vst [vmem:[%s279 + $0x8] sm:$0xff] %v479
        %s482 = sand.u32 %s142, 1
        %s483 = scalar_lea.sflag [#allocation4], %s482
        %s484 = sand.u32 %s142, 1
        %s485 = smul.addr %s484, 16
        %s486 = scalar_lea.vmem [#allocation10], %s485
        // Predicated region
        $region57: #{tpu_custom_call.1} parent=39 // pred_check
          %p487 = pneg %p152
        $region58: #{tpu_custom_call.1} parent=39 // pred_check_branch
          %489 = sbr.rel (%p487) target = $region60
        $region59: #{tpu_custom_call.1} parent=39 // pred_region
          %s491 = ssub.s32 256, 256
          %492 = vsyncadd %s483, %s491
          %s493 = smul.addr %s24, 2
          %s494 = smul.addr %s493, 128
          %s495 = scalar_lea.hbm %s5, %s494
          %s497 = sshll.u32 %s486, 4
          %s498 = int_to_ptr.vmem [resolvable:$true] %s497
          %500 = dma.vmem_to_hbm [thread:$0]  %s498, 256, %s495, %s483
        $region60: #{tpu_custom_call.1} parent=39 // pred_fallthru
          _
      $region40: #{tpu_custom_call.1} parent=5 // pred_fallthru
        _
      %p501 = scmp.le.s32.totalorder 2, %s19
      // Predicated region
      $region61: #{tpu_custom_call.1} parent=5 // pred_check
        %p502 = pneg %p501
      $region62: #{tpu_custom_call.1} parent=5 // pred_check_branch
        %504 = sbr.rel (%p502) target = $region64
      $region63: #{tpu_custom_call.1} parent=5 // pred_region
        %s505 = ssub.s32 %s19, 2
        // Predicated region
        $region65: #{tpu_custom_call.1} parent=63 // pred_check
          %p506 = pneg %p158
        $region66: #{tpu_custom_call.1} parent=63 // pred_check_branch
          %508 = sbr.rel (%p506) target = $region68
        $region67: #{tpu_custom_call.1} parent=63 // pred_region
          %s509 = sand.u32 %s143, 1
          %s510 = scalar_lea.sflag [#allocation4], %s509
          %s511 = sand.u32 %s143, 1
          %s512 = smul.addr %s511, 16
          %s513 = scalar_lea.vmem [#allocation10], %s512
          %514 = dma.done %s510, 256
        $region68: #{tpu_custom_call.1} parent=63 // pred_fallthru
          _
      $region64: #{tpu_custom_call.1} parent=5 // pred_fallthru
        _
    $region6: #{tpu_custom_call.1} parent=1 // loop_footer
      %s23 = sadd.s32 1, %s19
    $region7: #{tpu_custom_call.1} parent=1 // loop_footer_branch
      %18 = sbr.rel target = $region3
    $region8: #{tpu_custom_call.1} parent=1 // loop_exit
      _
    %515 = vsyncpa [#allocation3], 1
    %s516 = scalar_lea.sflag [#allocation3], 1
    %517 = vsyncpa %s516, 1
    %518 = vsyncpa [#allocation6], 1
    %519 = vsyncpa [#allocation9], 1
    %520 = vsyncpa [#allocation4], 1
    %s521 = scalar_lea.sflag [#allocation4], 1
    %522 = vsyncpa %s521, 1

</llo_original>
